<compile_context>
chip_gen: v6e
topology: v6e:2x2x1
jax: 0.10.0
libtpu: 0.0.40
codegen_flags: <defaults>
</compile_context>

<pallas_src>
import numpy as np
import jax
import jax.numpy as jnp
from jax import lax
from jax.experimental import pallas as pl
from jax.experimental.pallas import tpu as pltpu

MERSENNE_PRIME = (1 << 61) - 1

_CHUNK = 8      # row sub-tile inside a grid block: (8, 128) uint32 == exactly one vreg
_P_TILE = 128   # lane tile (one vreg wide) -> per-chunk working set stays register-resident


def _round_up(v, m):
    return ((v + m - 1) // m) * m


# ----------------------------- in-kernel limb arithmetic -----------------------------

def _carry4(cols):
    """Propagate carries over 4 little-endian 16-bit limb columns (uint32 lanes).

    Returns the represented value mod 2**64 as 4 limbs, each <= 0xFFFF.
    Only Python-int literals are used, so nothing is captured as a jax.Array const.
    """
    out = []
    carry = None
    for k in range(4):
        t = cols[k] if carry is None else cols[k] + carry
        out.append(t & 0xFFFF)
        carry = t >> 16
    return out


def _mod_reduce_signed(u):
    """Given u = value mod 2**64 (4 normalized limbs), return (int64 view of u) % p.

    p = 2**61 - 1; 2**61 == 1 and 2**64 == 8 (mod p), so
      signed(u) mod p == (lo61 + hi3 - 8*sign) mod p.
    Compute r = lo61 + hi3 + sign*(p - 8) in [0, 2p), then conditionally subtract p.
    """
    l0, l1, l2, l3 = u
    lo61_3 = l3 & 0x1FFF          # bits 48..60
    hi3 = l3 >> 13                # bits 61..63 (0..7)
    sign = l3 >> 15               # bit 63 (0/1)

    # p - 8 = 0x1FFF_FFFF_FFFF_FFF7 (little-endian 16-bit limbs)
    r = _carry4([
        l0 + hi3 + sign * 0xFFF7,
        l1 + sign * 0xFFFF,
        l2 + sign * 0xFFFF,
        lo61_3 + sign * 0x1FFF,
    ])

    a0, a1, a2, a3 = (x.astype(jnp.int32) for x in r)
    ge = (a3 >= 0x2000) | ((a3 == 0x1FFF) & (a2 == 0xFFFF)
                           & (a1 == 0xFFFF) & (a0 == 0xFFFF))     # r >= p ?

    # r - p == r + (2**64 - p) mod 2**64; 2**64 - p = 0xE000_0000_0000_0001
    sub = _carry4([r[0] + 0x0001, r[1] + 0, r[2] + 0, r[3] + 0xE000])

    return [jnp.where(ge, sub[k], r[k]) for k in range(4)]


# ----------------------------- the Pallas kernel -----------------------------

def _fourway_kernel(x_ref, p_ref, lo_ref, hi_ref):
    # x_ref:  (TN, 12)  uint32 — limbs of x, x**2, x**3 (each mod 2**64)
    # p_ref:  (16, TP)  uint32 — limbs of a, b, c, d (row = 4*poly + limb)
    # lo/hi:  (TN, TP)  uint32 — low/high 32 bits of the 61-bit result
    tn = x_ref.shape[0]
    tp = p_ref.shape[1]
    n_chunks = tn // _CHUNK

    # Pre-expand the 16 coefficient rows once per grid step to (CHUNK, TP) vreg-native
    # operands (sublane broadcast); inside the chunk loop they ride the under-subscribed
    # vector-load slots instead of being re-broadcast at every multiply.
    coef = [jnp.broadcast_to(p_ref[r:r + 1, :], (_CHUNK, tp)) for r in range(16)]

    def body(c, carry):
        r0 = pl.multiple_of(c * _CHUNK, _CHUNK)
        xc = x_ref[pl.ds(r0, _CHUNK), :]                         # (CHUNK, 12)

        # Lane-broadcast the 12 x-limb columns once per chunk (XLU work, hidden under VALU).
        xb = [jnp.broadcast_to(xc[:, k:k + 1], (_CHUNK, tp)) for k in range(12)]
        pows = (xb[8:12], xb[4:8], xb[0:4])                      # limbs of x**3, x**2, x

        # Fused raw column accumulation of a*x**3 + b*x**2 + c*x + d (mod 2**64).
        # Max column sum is 22 terms of <= 0xFFFF (< 2**21): no uint32 overflow,
        # so a single carry propagation at the end suffices.
        acc = [None, None, None, None]

        def _add(k, v):
            acc[k] = v if acc[k] is None else acc[k] + v

        for poly, xs in zip((0, 1, 2), pows):                    # a·x^3 + b·x^2 + c·x
            for i in range(4):
                ci = coef[4 * poly + i]
                for j in range(4 - i):
                    prod = ci * xs[j]                            # <= 0xFFFF^2 < 2**32, exact
                    _add(i + j, prod & 0xFFFF)
                    if i + j + 1 < 4:
                        _add(i + j + 1, prod >> 16)
        for k in range(4):                                       # + d
            _add(k, coef[12 + k])

        u = _carry4(acc)                    # full polynomial, mod 2**64
        res = _mod_reduce_signed(u)         # in [0, p)

        lo_ref[pl.ds(r0, _CHUNK), :] = res[0] | (res[1] << 16)
        hi_ref[pl.ds(r0, _CHUNK), :] = res[2] | (res[3] << 16)
        return carry

    unroll = 2 if (n_chunks > 1 and n_chunks % 2 == 0) else 1
    lax.fori_loop(0, n_chunks, body, 0, unroll=unroll)


# ----------------------------- host-side sizing -----------------------------

def _vmem_budget_bytes():
    """Per-generation VMEM request: <= 48 MiB, and <= half of physical VMEM (v7x has 64 MiB)."""
    cap = None
    try:
        cap = int(pltpu.get_tpu_info().vmem_capacity_bytes)
    except Exception:
        cap = None
    if cap is None:
        return 32 * 1024 * 1024          # safe on every generation
    return int(min(48 * 1024 * 1024, max(16 * 1024 * 1024, cap // 2)))


def _choose_tile_n(n, p_tile, vmem_budget):
    """Row tile for the grid block. With the in-kernel chunking, the only live VMEM per
    step is ~2 double-buffered lo/hi output tiles + a double-buffered x tile + params."""
    n8 = _round_up(max(int(n), 1), 8)
    per_row = 2 * 2 * p_tile * 4 + 2 * 12 * 4          # 4 output-plane buffers + 2 x-limb buffers
    tn = int((vmem_budget * 3 // 4) // per_row)        # keep headroom
    tn = max(8, min(4096, (tn // 8) * 8))
    if tn >= n8 and n8 >= 16:
        # Keep >= 2 row-grid steps so dimension_semantics=("parallel", ...) can actually
        # shard across v7x's 2 TensorCores (no cost on single-TC v5e/v6e).
        tn = max(8, ((n8 // 2) // 8) * 8)
    return min(tn, n8)


# ----------------------------- host-side wrapper -----------------------------

class FourWayIndependentPallas:
    """Pallas port of FourWayIndependent(*size)."""

    def __init__(self, *size: int, seed: int = 1234):
        self.size = tuple(size)
        self.P = int(np.prod(self.size)) if self.size else 1
        self.TP = _P_TILE
        self.P_pad = _round_up(max(self.P, 1), self.TP)

        # Deterministic parameter init matching the module's distribution:
        #   a,b,c ~ U[1, p),  d ~ U[0, p)
        rng = np.random.default_rng(seed)
        abc = rng.integers(1, MERSENNE_PRIME, size=(3, self.P), dtype=np.int64)
        dd = rng.integers(0, MERSENNE_PRIME, size=(1, self.P), dtype=np.int64)
        self.params = np.concatenate([abc, dd], axis=0)                  # (4, P) int64

        p_u = self.params.astype(np.uint64)
        limbs = np.zeros((16, self.P_pad), dtype=np.uint32)              # rows = 4*poly + limb
        for poly in range(4):
            for k in range(4):
                limbs[4 * poly + k, :self.P] = (
                    (p_u[poly] >> np.uint64(16 * k)) & np.uint64(0xFFFF)).astype(np.uint32)
        self.param_limbs = jnp.asarray(limbs)                            # (16, P_pad)

    def _x_limbs(self, x: np.ndarray, n_pad: int):
        n = x.shape[0]
        x_u = np.ascontiguousarray(np.asarray(x, dtype=np.int64).reshape(n)).view(np.uint64)
        x2_u = x_u * x_u            # wraps mod 2**64 == int64 wraparound bit pattern
        x3_u = x2_u * x_u
        limbs = np.zeros((n_pad, 12), dtype=np.uint32)
        for blk, vals in enumerate((x_u, x2_u, x3_u)):
            for k in range(4):
                limbs[:n, 4 * blk + k] = (
                    (vals >> np.uint64(16 * k)) & np.uint64(0xFFFF)).astype(np.uint32)
        return jnp.asarray(limbs)

    def run_kernel(self, x: np.ndarray, tile_n: int | None = None):
        assert x.ndim == 2 and x.shape[1] == 1
        n = x.shape[0]
        p_pad = self.P_pad
        tp = self.TP

        budget = _vmem_budget_bytes()
        tn = _choose_tile_n(n, tp, budget) if tile_n is None else max(8, (int(tile_n) // 8) * 8)
        n_pad = _round_up(max(n, 1), tn)
        grid = (n_pad // tn, p_pad // tp)

        x_limbs = self._x_limbs(x, n_pad)                                # (n_pad, 12)

        out_shape = (jax.ShapeDtypeStruct((n_pad, p_pad), jnp.uint32),
                     jax.ShapeDtypeStruct((n_pad, p_pad), jnp.uint32))
        lo, hi = pl.pallas_call(
            _fourway_kernel,
            out_shape=out_shape,
            grid=grid,
            in_specs=[
                pl.BlockSpec((tn, 12), lambda i, j: (i, 0)),     # row tile (resident across j)
                pl.BlockSpec((16, tp), lambda i, j: (0, j)),     # coefficient lane tile
            ],
            out_specs=(
                pl.BlockSpec((tn, tp), lambda i, j: (i, j)),
                pl.BlockSpec((tn, tp), lambda i, j: (i, j)),
            ),
            compiler_params=pltpu.CompilerParams(
                dimension_semantics=("parallel", "parallel"),    # megacore-shardable
                vmem_limit_bytes=budget,
            ),
        )(x_limbs, self.param_limbs)
        return lo, hi

    def assemble(self, lo, hi, n):
        # TODO(synk): for large N*P keep the (lo, hi) uint32 planes as the public output;
        # this host-side int64 combine is only used for the small self-check below.
        lo_np = np.asarray(lo)[:n, :self.P].astype(np.uint64)
        hi_np = np.asarray(hi)[:n, :self.P].astype(np.uint64)
        out = ((hi_np << np.uint64(32)) | lo_np).astype(np.int64)        # values < 2**61
        return out.reshape((n,) + self.size)                             # == torch .view(-1, *size)

    def __call__(self, x: np.ndarray, tile_n: int | None = None):
        lo, hi = self.run_kernel(x, tile_n=tile_n)
        jax.block_until_ready((lo, hi))
        return self.assemble(lo, hi, x.shape[0])


# ----------------------------- exact reference (PyTorch int64 semantics) -----------------------------

def _reference(x: np.ndarray, params: np.ndarray, size):
    p = MERSENNE_PRIME
    n, P = x.shape[0], params.shape[1]
    out = np.zeros((n, P), dtype=np.int64)
    for i in range(n):
        xi = int(x[i, 0])
        for j in range(P):
            a, b, c, d = (int(params[t, j]) for t in range(4))
            u = (a * xi ** 3 + b * xi ** 2 + c * xi + d) & ((1 << 64) - 1)  # int64 wraparound
            if u >= (1 << 63):
                u -= (1 << 64)                                              # signed view
            out[i, j] = u % p                                               # torch remainder
    return out.reshape((n,) + tuple(size))


# ----------------------------- demo / self-check -----------------------------

if __name__ == "__main__":
    key = jax.random.PRNGKey(0)
    k1, k2, k3 = jax.random.split(key, 3)

    # Config 1: lane-aligned P (=128), multi-step row grid (tile_n=8 -> grid=(3,1)),
    # exercising the in-kernel chunk loop and dynamic-offset stores.
    N1, SIZE1 = 24, (4, 32)
    mod1 = FourWayIndependentPallas(*SIZE1, seed=1234)
    hi_bits = np.asarray(jax.random.randint(k1, (N1,), 0, 1 << 29, dtype=jnp.int32)).astype(np.uint64)
    lo_bits = np.asarray(jax.random.randint(k2, (N1,), 0, jnp.iinfo(jnp.int32).max,
                                            dtype=jnp.int32)).astype(np.uint64)
    x1 = ((hi_bits << np.uint64(32)) | lo_bits).astype(np.int64).reshape(N1, 1)

    out1 = mod1(x1, tile_n=8)
    ref1 = _reference(x1, mod1.params, SIZE1)
    assert out1.shape == (N1,) + SIZE1 and out1.dtype == np.int64
    assert np.array_equal(out1, ref1), "config-1 mismatch vs exact int64 reference"

    # Config 2: P not a multiple of 128 (exercises lane padding) + negative inputs
    # (exercises signed int64 wraparound / remainder path), default tiling & VMEM budget.
    N2, SIZE2 = 8, (3, 10)
    mod2 = FourWayIndependentPallas(*SIZE2, seed=7)
    vals = np.asarray(jax.random.randint(k3, (N2,), -(1 << 30), 1 << 30, dtype=jnp.int32)).astype(np.int64)
    x2 = (vals * np.int64(9973) - np.int64(1 << 40)).reshape(N2, 1)

    out2 = mod2(x2)
    ref2 = _reference(x2, mod2.params, SIZE2)
    assert out2.shape == (N2,) + SIZE2 and out2.dtype == np.int64
    assert np.array_equal(out2, ref2), "config-2 mismatch vs exact int64 reference"

    print("KERNEL_OK")
</pallas_src>

<mosaic_0001>
module attributes {stable_mosaic.version = 11 : i64} {
  func.func @_fourway_kernel(%arg0: i32, %arg1: i32, %arg2: memref<8x12xi32, #tpu.memory_space<vmem>>, %arg3: memref<16x128xi32, #tpu.memory_space<vmem>>, %arg4: memref<8x128xi32, #tpu.memory_space<vmem>>, %arg5: memref<8x128xi32, #tpu.memory_space<vmem>>) attributes {dimension_semantics = [#tpu.dimension_semantics<parallel>, #tpu.dimension_semantics<parallel>], iteration_bounds = array<i64: 3, 1>, scalar_prefetch = 0 : i64, scratch_operands = 0 : i64, tpu.core_type = #tpu.core_type<tc>, window_params = [{transform_indices = @transform_0, window_bounds = array<i64: 8, 12>}, {transform_indices = @transform_1, window_bounds = array<i64: 16, 128>}, {transform_indices = @transform_2, window_bounds = array<i64: 8, 128>}, {transform_indices = @transform_3, window_bounds = array<i64: 8, 128>}]} {
    %c0 = arith.constant 0 : index
    %c0_0 = arith.constant 0 : index
    %0 = vector.load %arg3[%c0, %c0_0] : memref<16x128xi32, #tpu.memory_space<vmem>>, vector<1x128xi32>
    %1 = vector.shape_cast %0 : vector<1x128xi32> to vector<1x128xi32>
    %2 = vector.broadcast %1 : vector<1x128xi32> to vector<8x128xi32>
    %c1 = arith.constant 1 : index
    %c0_1 = arith.constant 0 : index
    %3 = vector.load %arg3[%c1, %c0_1] : memref<16x128xi32, #tpu.memory_space<vmem>>, vector<1x128xi32>
    %4 = vector.shape_cast %3 : vector<1x128xi32> to vector<1x128xi32>
    %5 = vector.broadcast %4 : vector<1x128xi32> to vector<8x128xi32>
    %c2 = arith.constant 2 : index
    %c0_2 = arith.constant 0 : index
    %6 = vector.load %arg3[%c2, %c0_2] : memref<16x128xi32, #tpu.memory_space<vmem>>, vector<1x128xi32>
    %7 = vector.shape_cast %6 : vector<1x128xi32> to vector<1x128xi32>
    %8 = vector.broadcast %7 : vector<1x128xi32> to vector<8x128xi32>
    %c3 = arith.constant 3 : index
    %c0_3 = arith.constant 0 : index
    %9 = vector.load %arg3[%c3, %c0_3] : memref<16x128xi32, #tpu.memory_space<vmem>>, vector<1x128xi32>
    %10 = vector.shape_cast %9 : vector<1x128xi32> to vector<1x128xi32>
    %11 = vector.broadcast %10 : vector<1x128xi32> to vector<8x128xi32>
    %c4 = arith.constant 4 : index
    %c0_4 = arith.constant 0 : index
    %12 = vector.load %arg3[%c4, %c0_4] : memref<16x128xi32, #tpu.memory_space<vmem>>, vector<1x128xi32>
    %13 = vector.shape_cast %12 : vector<1x128xi32> to vector<1x128xi32>
    %14 = vector.broadcast %13 : vector<1x128xi32> to vector<8x128xi32>
    %c5 = arith.constant 5 : index
    %c0_5 = arith.constant 0 : index
    %15 = vector.load %arg3[%c5, %c0_5] : memref<16x128xi32, #tpu.memory_space<vmem>>, vector<1x128xi32>
    %16 = vector.shape_cast %15 : vector<1x128xi32> to vector<1x128xi32>
    %17 = vector.broadcast %16 : vector<1x128xi32> to vector<8x128xi32>
    %c6 = arith.constant 6 : index
    %c0_6 = arith.constant 0 : index
    %18 = vector.load %arg3[%c6, %c0_6] : memref<16x128xi32, #tpu.memory_space<vmem>>, vector<1x128xi32>
    %19 = vector.shape_cast %18 : vector<1x128xi32> to vector<1x128xi32>
    %20 = vector.broadcast %19 : vector<1x128xi32> to vector<8x128xi32>
    %c7 = arith.constant 7 : index
    %c0_7 = arith.constant 0 : index
    %21 = vector.load %arg3[%c7, %c0_7] : memref<16x128xi32, #tpu.memory_space<vmem>>, vector<1x128xi32>
    %22 = vector.shape_cast %21 : vector<1x128xi32> to vector<1x128xi32>
    %23 = vector.broadcast %22 : vector<1x128xi32> to vector<8x128xi32>
    %c8 = arith.constant 8 : index
    %c0_8 = arith.constant 0 : index
    %24 = vector.load %arg3[%c8, %c0_8] : memref<16x128xi32, #tpu.memory_space<vmem>>, vector<1x128xi32>
    %25 = vector.shape_cast %24 : vector<1x128xi32> to vector<1x128xi32>
    %26 = vector.broadcast %25 : vector<1x128xi32> to vector<8x128xi32>
    %c9 = arith.constant 9 : index
    %c0_9 = arith.constant 0 : index
    %27 = vector.load %arg3[%c9, %c0_9] : memref<16x128xi32, #tpu.memory_space<vmem>>, vector<1x128xi32>
    %28 = vector.shape_cast %27 : vector<1x128xi32> to vector<1x128xi32>
    %29 = vector.broadcast %28 : vector<1x128xi32> to vector<8x128xi32>
    %c10 = arith.constant 10 : index
    %c0_10 = arith.constant 0 : index
    %30 = vector.load %arg3[%c10, %c0_10] : memref<16x128xi32, #tpu.memory_space<vmem>>, vector<1x128xi32>
    %31 = vector.shape_cast %30 : vector<1x128xi32> to vector<1x128xi32>
    %32 = vector.broadcast %31 : vector<1x128xi32> to vector<8x128xi32>
    %c11 = arith.constant 11 : index
    %c0_11 = arith.constant 0 : index
    %33 = vector.load %arg3[%c11, %c0_11] : memref<16x128xi32, #tpu.memory_space<vmem>>, vector<1x128xi32>
    %34 = vector.shape_cast %33 : vector<1x128xi32> to vector<1x128xi32>
    %35 = vector.broadcast %34 : vector<1x128xi32> to vector<8x128xi32>
    %c12 = arith.constant 12 : index
    %c0_12 = arith.constant 0 : index
    %36 = vector.load %arg3[%c12, %c0_12] : memref<16x128xi32, #tpu.memory_space<vmem>>, vector<1x128xi32>
    %37 = vector.shape_cast %36 : vector<1x128xi32> to vector<1x128xi32>
    %38 = vector.broadcast %37 : vector<1x128xi32> to vector<8x128xi32>
    %c13 = arith.constant 13 : index
    %c0_13 = arith.constant 0 : index
    %39 = vector.load %arg3[%c13, %c0_13] : memref<16x128xi32, #tpu.memory_space<vmem>>, vector<1x128xi32>
    %40 = vector.shape_cast %39 : vector<1x128xi32> to vector<1x128xi32>
    %41 = vector.broadcast %40 : vector<1x128xi32> to vector<8x128xi32>
    %c14 = arith.constant 14 : index
    %c0_14 = arith.constant 0 : index
    %42 = vector.load %arg3[%c14, %c0_14] : memref<16x128xi32, #tpu.memory_space<vmem>>, vector<1x128xi32>
    %43 = vector.shape_cast %42 : vector<1x128xi32> to vector<1x128xi32>
    %44 = vector.broadcast %43 : vector<1x128xi32> to vector<8x128xi32>
    %c15 = arith.constant 15 : index
    %c0_15 = arith.constant 0 : index
    %45 = vector.load %arg3[%c15, %c0_15] : memref<16x128xi32, #tpu.memory_space<vmem>>, vector<1x128xi32>
    %46 = vector.shape_cast %45 : vector<1x128xi32> to vector<1x128xi32>
    %47 = vector.broadcast %46 : vector<1x128xi32> to vector<8x128xi32>
    %c0_i32 = arith.constant 0 : i32
    %c8_i32 = arith.constant 8 : i32
    %48 = arith.muli %c0_i32, %c8_i32 : i32
    %49 = tpu.assume_multiple %48, 8 : i32
    %50 = arith.index_cast %49 : i32 to index
    %c0_16 = arith.constant 0 : index
    %51 = vector.load %arg2[%50, %c0_16] : memref<8x12xi32, #tpu.memory_space<vmem>>, vector<8x12xi32>
    %52 = vector.extract_strided_slice %51 {offsets = [0, 0], sizes = [8, 1], strides = [1, 1]} : vector<8x12xi32> to vector<8x1xi32>
    %53 = vector.shape_cast %52 : vector<8x1xi32> to vector<8x1xi32>
    %54 = vector.broadcast %53 : vector<8x1xi32> to vector<8x128xi32>
    %55 = vector.extract_strided_slice %51 {offsets = [0, 1], sizes = [8, 1], strides = [1, 1]} : vector<8x12xi32> to vector<8x1xi32>
    %56 = vector.shape_cast %55 : vector<8x1xi32> to vector<8x1xi32>
    %57 = vector.broadcast %56 : vector<8x1xi32> to vector<8x128xi32>
    %58 = vector.extract_strided_slice %51 {offsets = [0, 2], sizes = [8, 1], strides = [1, 1]} : vector<8x12xi32> to vector<8x1xi32>
    %59 = vector.shape_cast %58 : vector<8x1xi32> to vector<8x1xi32>
    %60 = vector.broadcast %59 : vector<8x1xi32> to vector<8x128xi32>
    %61 = vector.extract_strided_slice %51 {offsets = [0, 3], sizes = [8, 1], strides = [1, 1]} : vector<8x12xi32> to vector<8x1xi32>
    %62 = vector.shape_cast %61 : vector<8x1xi32> to vector<8x1xi32>
    %63 = vector.broadcast %62 : vector<8x1xi32> to vector<8x128xi32>
    %64 = vector.extract_strided_slice %51 {offsets = [0, 4], sizes = [8, 1], strides = [1, 1]} : vector<8x12xi32> to vector<8x1xi32>
    %65 = vector.shape_cast %64 : vector<8x1xi32> to vector<8x1xi32>
    %66 = vector.broadcast %65 : vector<8x1xi32> to vector<8x128xi32>
    %67 = vector.extract_strided_slice %51 {offsets = [0, 5], sizes = [8, 1], strides = [1, 1]} : vector<8x12xi32> to vector<8x1xi32>
    %68 = vector.shape_cast %67 : vector<8x1xi32> to vector<8x1xi32>
    %69 = vector.broadcast %68 : vector<8x1xi32> to vector<8x128xi32>
    %70 = vector.extract_strided_slice %51 {offsets = [0, 6], sizes = [8, 1], strides = [1, 1]} : vector<8x12xi32> to vector<8x1xi32>
    %71 = vector.shape_cast %70 : vector<8x1xi32> to vector<8x1xi32>
    %72 = vector.broadcast %71 : vector<8x1xi32> to vector<8x128xi32>
    %73 = vector.extract_strided_slice %51 {offsets = [0, 7], sizes = [8, 1], strides = [1, 1]} : vector<8x12xi32> to vector<8x1xi32>
    %74 = vector.shape_cast %73 : vector<8x1xi32> to vector<8x1xi32>
    %75 = vector.broadcast %74 : vector<8x1xi32> to vector<8x128xi32>
    %76 = vector.extract_strided_slice %51 {offsets = [0, 8], sizes = [8, 1], strides = [1, 1]} : vector<8x12xi32> to vector<8x1xi32>
    %77 = vector.shape_cast %76 : vector<8x1xi32> to vector<8x1xi32>
    %78 = vector.broadcast %77 : vector<8x1xi32> to vector<8x128xi32>
    %79 = vector.extract_strided_slice %51 {offsets = [0, 9], sizes = [8, 1], strides = [1, 1]} : vector<8x12xi32> to vector<8x1xi32>
    %80 = vector.shape_cast %79 : vector<8x1xi32> to vector<8x1xi32>
    %81 = vector.broadcast %80 : vector<8x1xi32> to vector<8x128xi32>
    %82 = vector.extract_strided_slice %51 {offsets = [0, 10], sizes = [8, 1], strides = [1, 1]} : vector<8x12xi32> to vector<8x1xi32>
    %83 = vector.shape_cast %82 : vector<8x1xi32> to vector<8x1xi32>
    %84 = vector.broadcast %83 : vector<8x1xi32> to vector<8x128xi32>
    %85 = vector.extract_strided_slice %51 {offsets = [0, 11], sizes = [8, 1], strides = [1, 1]} : vector<8x12xi32> to vector<8x1xi32>
    %86 = vector.shape_cast %85 : vector<8x1xi32> to vector<8x1xi32>
    %87 = vector.broadcast %86 : vector<8x1xi32> to vector<8x128xi32>
    %88 = arith.muli %2, %78 : vector<8x128xi32>
    %c65535_i32 = arith.constant 65535 : i32
    %89 = vector.broadcast %c65535_i32 : i32 to vector<8x128xi32>
    %90 = arith.andi %88, %89 : vector<8x128xi32>
    %c16_i32 = arith.constant 16 : i32
    %91 = vector.broadcast %c16_i32 : i32 to vector<8x128xi32>
    %92 = arith.shrui %88, %91 : vector<8x128xi32>
    %93 = arith.muli %2, %81 : vector<8x128xi32>
    %c65535_i32_17 = arith.constant 65535 : i32
    %94 = vector.broadcast %c65535_i32_17 : i32 to vector<8x128xi32>
    %95 = arith.andi %93, %94 : vector<8x128xi32>
    %96 = arith.addi %92, %95 : vector<8x128xi32>
    %c16_i32_18 = arith.constant 16 : i32
    %97 = vector.broadcast %c16_i32_18 : i32 to vector<8x128xi32>
    %98 = arith.shrui %93, %97 : vector<8x128xi32>
    %99 = arith.muli %2, %84 : vector<8x128xi32>
    %c65535_i32_19 = arith.constant 65535 : i32
    %100 = vector.broadcast %c65535_i32_19 : i32 to vector<8x128xi32>
    %101 = arith.andi %99, %100 : vector<8x128xi32>
    %102 = arith.addi %98, %101 : vector<8x128xi32>
    %c16_i32_20 = arith.constant 16 : i32
    %103 = vector.broadcast %c16_i32_20 : i32 to vector<8x128xi32>
    %104 = arith.shrui %99, %103 : vector<8x128xi32>
    %105 = arith.muli %2, %87 : vector<8x128xi32>
    %c65535_i32_21 = arith.constant 65535 : i32
    %106 = vector.broadcast %c65535_i32_21 : i32 to vector<8x128xi32>
    %107 = arith.andi %105, %106 : vector<8x128xi32>
    %108 = arith.addi %104, %107 : vector<8x128xi32>
    %109 = arith.muli %5, %78 : vector<8x128xi32>
    %c65535_i32_22 = arith.constant 65535 : i32
    %110 = vector.broadcast %c65535_i32_22 : i32 to vector<8x128xi32>
    %111 = arith.andi %109, %110 : vector<8x128xi32>
    %112 = arith.addi %96, %111 : vector<8x128xi32>
    %c16_i32_23 = arith.constant 16 : i32
    %113 = vector.broadcast %c16_i32_23 : i32 to vector<8x128xi32>
    %114 = arith.shrui %109, %113 : vector<8x128xi32>
    %115 = arith.addi %102, %114 : vector<8x128xi32>
    %116 = arith.muli %5, %81 : vector<8x128xi32>
    %c65535_i32_24 = arith.constant 65535 : i32
    %117 = vector.broadcast %c65535_i32_24 : i32 to vector<8x128xi32>
    %118 = arith.andi %116, %117 : vector<8x128xi32>
    %119 = arith.addi %115, %118 : vector<8x128xi32>
    %c16_i32_25 = arith.constant 16 : i32
    %120 = vector.broadcast %c16_i32_25 : i32 to vector<8x128xi32>
    %121 = arith.shrui %116, %120 : vector<8x128xi32>
    %122 = arith.addi %108, %121 : vector<8x128xi32>
    %123 = arith.muli %5, %84 : vector<8x128xi32>
    %c65535_i32_26 = arith.constant 65535 : i32
    %124 = vector.broadcast %c65535_i32_26 : i32 to vector<8x128xi32>
    %125 = arith.andi %123, %124 : vector<8x128xi32>
    %126 = arith.addi %122, %125 : vector<8x128xi32>
    %127 = arith.muli %8, %78 : vector<8x128xi32>
    %c65535_i32_27 = arith.constant 65535 : i32
    %128 = vector.broadcast %c65535_i32_27 : i32 to vector<8x128xi32>
    %129 = arith.andi %127, %128 : vector<8x128xi32>
    %130 = arith.addi %119, %129 : vector<8x128xi32>
    %c16_i32_28 = arith.constant 16 : i32
    %131 = vector.broadcast %c16_i32_28 : i32 to vector<8x128xi32>
    %132 = arith.shrui %127, %131 : vector<8x128xi32>
    %133 = arith.addi %126, %132 : vector<8x128xi32>
    %134 = arith.muli %8, %81 : vector<8x128xi32>
    %c65535_i32_29 = arith.constant 65535 : i32
    %135 = vector.broadcast %c65535_i32_29 : i32 to vector<8x128xi32>
    %136 = arith.andi %134, %135 : vector<8x128xi32>
    %137 = arith.addi %133, %136 : vector<8x128xi32>
    %138 = arith.muli %11, %78 : vector<8x128xi32>
    %c65535_i32_30 = arith.constant 65535 : i32
    %139 = vector.broadcast %c65535_i32_30 : i32 to vector<8x128xi32>
    %140 = arith.andi %138, %139 : vector<8x128xi32>
    %141 = arith.addi %137, %140 : vector<8x128xi32>
    %142 = arith.muli %14, %66 : vector<8x128xi32>
    %c65535_i32_31 = arith.constant 65535 : i32
    %143 = vector.broadcast %c65535_i32_31 : i32 to vector<8x128xi32>
    %144 = arith.andi %142, %143 : vector<8x128xi32>
    %145 = arith.addi %90, %144 : vector<8x128xi32>
    %c16_i32_32 = arith.constant 16 : i32
    %146 = vector.broadcast %c16_i32_32 : i32 to vector<8x128xi32>
    %147 = arith.shrui %142, %146 : vector<8x128xi32>
    %148 = arith.addi %112, %147 : vector<8x128xi32>
    %149 = arith.muli %14, %69 : vector<8x128xi32>
    %c65535_i32_33 = arith.constant 65535 : i32
    %150 = vector.broadcast %c65535_i32_33 : i32 to vector<8x128xi32>
    %151 = arith.andi %149, %150 : vector<8x128xi32>
    %152 = arith.addi %148, %151 : vector<8x128xi32>
    %c16_i32_34 = arith.constant 16 : i32
    %153 = vector.broadcast %c16_i32_34 : i32 to vector<8x128xi32>
    %154 = arith.shrui %149, %153 : vector<8x128xi32>
    %155 = arith.addi %130, %154 : vector<8x128xi32>
    %156 = arith.muli %14, %72 : vector<8x128xi32>
    %c65535_i32_35 = arith.constant 65535 : i32
    %157 = vector.broadcast %c65535_i32_35 : i32 to vector<8x128xi32>
    %158 = arith.andi %156, %157 : vector<8x128xi32>
    %159 = arith.addi %155, %158 : vector<8x128xi32>
    %c16_i32_36 = arith.constant 16 : i32
    %160 = vector.broadcast %c16_i32_36 : i32 to vector<8x128xi32>
    %161 = arith.shrui %156, %160 : vector<8x128xi32>
    %162 = arith.addi %141, %161 : vector<8x128xi32>
    %163 = arith.muli %14, %75 : vector<8x128xi32>
    %c65535_i32_37 = arith.constant 65535 : i32
    %164 = vector.broadcast %c65535_i32_37 : i32 to vector<8x128xi32>
    %165 = arith.andi %163, %164 : vector<8x128xi32>
    %166 = arith.addi %162, %165 : vector<8x128xi32>
    %167 = arith.muli %17, %66 : vector<8x128xi32>
    %c65535_i32_38 = arith.constant 65535 : i32
    %168 = vector.broadcast %c65535_i32_38 : i32 to vector<8x128xi32>
    %169 = arith.andi %167, %168 : vector<8x128xi32>
    %170 = arith.addi %152, %169 : vector<8x128xi32>
    %c16_i32_39 = arith.constant 16 : i32
    %171 = vector.broadcast %c16_i32_39 : i32 to vector<8x128xi32>
    %172 = arith.shrui %167, %171 : vector<8x128xi32>
    %173 = arith.addi %159, %172 : vector<8x128xi32>
    %174 = arith.muli %17, %69 : vector<8x128xi32>
    %c65535_i32_40 = arith.constant 65535 : i32
    %175 = vector.broadcast %c65535_i32_40 : i32 to vector<8x128xi32>
    %176 = arith.andi %174, %175 : vector<8x128xi32>
    %177 = arith.addi %173, %176 : vector<8x128xi32>
    %c16_i32_41 = arith.constant 16 : i32
    %178 = vector.broadcast %c16_i32_41 : i32 to vector<8x128xi32>
    %179 = arith.shrui %174, %178 : vector<8x128xi32>
    %180 = arith.addi %166, %179 : vector<8x128xi32>
    %181 = arith.muli %17, %72 : vector<8x128xi32>
    %c65535_i32_42 = arith.constant 65535 : i32
    %182 = vector.broadcast %c65535_i32_42 : i32 to vector<8x128xi32>
    %183 = arith.andi %181, %182 : vector<8x128xi32>
    %184 = arith.addi %180, %183 : vector<8x128xi32>
    %185 = arith.muli %20, %66 : vector<8x128xi32>
    %c65535_i32_43 = arith.constant 65535 : i32
    %186 = vector.broadcast %c65535_i32_43 : i32 to vector<8x128xi32>
    %187 = arith.andi %185, %186 : vector<8x128xi32>
    %188 = arith.addi %177, %187 : vector<8x128xi32>
    %c16_i32_44 = arith.constant 16 : i32
    %189 = vector.broadcast %c16_i32_44 : i32 to vector<8x128xi32>
    %190 = arith.shrui %185, %189 : vector<8x128xi32>
    %191 = arith.addi %184, %190 : vector<8x128xi32>
    %192 = arith.muli %20, %69 : vector<8x128xi32>
    %c65535_i32_45 = arith.constant 65535 : i32
    %193 = vector.broadcast %c65535_i32_45 : i32 to vector<8x128xi32>
    %194 = arith.andi %192, %193 : vector<8x128xi32>
    %195 = arith.addi %191, %194 : vector<8x128xi32>
    %196 = arith.muli %23, %66 : vector<8x128xi32>
    %c65535_i32_46 = arith.constant 65535 : i32
    %197 = vector.broadcast %c65535_i32_46 : i32 to vector<8x128xi32>
    %198 = arith.andi %196, %197 : vector<8x128xi32>
    %199 = arith.addi %195, %198 : vector<8x128xi32>
    %200 = arith.muli %26, %54 : vector<8x128xi32>
    %c65535_i32_47 = arith.constant 65535 : i32
    %201 = vector.broadcast %c65535_i32_47 : i32 to vector<8x128xi32>
    %202 = arith.andi %200, %201 : vector<8x128xi32>
    %203 = arith.addi %145, %202 : vector<8x128xi32>
    %c16_i32_48 = arith.constant 16 : i32
    %204 = vector.broadcast %c16_i32_48 : i32 to vector<8x128xi32>
    %205 = arith.shrui %200, %204 : vector<8x128xi32>
    %206 = arith.addi %170, %205 : vector<8x128xi32>
    %207 = arith.muli %26, %57 : vector<8x128xi32>
    %c65535_i32_49 = arith.constant 65535 : i32
    %208 = vector.broadcast %c65535_i32_49 : i32 to vector<8x128xi32>
    %209 = arith.andi %207, %208 : vector<8x128xi32>
    %210 = arith.addi %206, %209 : vector<8x128xi32>
    %c16_i32_50 = arith.constant 16 : i32
    %211 = vector.broadcast %c16_i32_50 : i32 to vector<8x128xi32>
    %212 = arith.shrui %207, %211 : vector<8x128xi32>
    %213 = arith.addi %188, %212 : vector<8x128xi32>
    %214 = arith.muli %26, %60 : vector<8x128xi32>
    %c65535_i32_51 = arith.constant 65535 : i32
    %215 = vector.broadcast %c65535_i32_51 : i32 to vector<8x128xi32>
    %216 = arith.andi %214, %215 : vector<8x128xi32>
    %217 = arith.addi %213, %216 : vector<8x128xi32>
    %c16_i32_52 = arith.constant 16 : i32
    %218 = vector.broadcast %c16_i32_52 : i32 to vector<8x128xi32>
    %219 = arith.shrui %214, %218 : vector<8x128xi32>
    %220 = arith.addi %199, %219 : vector<8x128xi32>
    %221 = arith.muli %26, %63 : vector<8x128xi32>
    %c65535_i32_53 = arith.constant 65535 : i32
    %222 = vector.broadcast %c65535_i32_53 : i32 to vector<8x128xi32>
    %223 = arith.andi %221, %222 : vector<8x128xi32>
    %224 = arith.addi %220, %223 : vector<8x128xi32>
    %225 = arith.muli %29, %54 : vector<8x128xi32>
    %c65535_i32_54 = arith.constant 65535 : i32
    %226 = vector.broadcast %c65535_i32_54 : i32 to vector<8x128xi32>
    %227 = arith.andi %225, %226 : vector<8x128xi32>
    %228 = arith.addi %210, %227 : vector<8x128xi32>
    %c16_i32_55 = arith.constant 16 : i32
    %229 = vector.broadcast %c16_i32_55 : i32 to vector<8x128xi32>
    %230 = arith.shrui %225, %229 : vector<8x128xi32>
    %231 = arith.addi %217, %230 : vector<8x128xi32>
    %232 = arith.muli %29, %57 : vector<8x128xi32>
    %c65535_i32_56 = arith.constant 65535 : i32
    %233 = vector.broadcast %c65535_i32_56 : i32 to vector<8x128xi32>
    %234 = arith.andi %232, %233 : vector<8x128xi32>
    %235 = arith.addi %231, %234 : vector<8x128xi32>
    %c16_i32_57 = arith.constant 16 : i32
    %236 = vector.broadcast %c16_i32_57 : i32 to vector<8x128xi32>
    %237 = arith.shrui %232, %236 : vector<8x128xi32>
    %238 = arith.addi %224, %237 : vector<8x128xi32>
    %239 = arith.muli %29, %60 : vector<8x128xi32>
    %c65535_i32_58 = arith.constant 65535 : i32
    %240 = vector.broadcast %c65535_i32_58 : i32 to vector<8x128xi32>
    %241 = arith.andi %239, %240 : vector<8x128xi32>
    %242 = arith.addi %238, %241 : vector<8x128xi32>
    %243 = arith.muli %32, %54 : vector<8x128xi32>
    %c65535_i32_59 = arith.constant 65535 : i32
    %244 = vector.broadcast %c65535_i32_59 : i32 to vector<8x128xi32>
    %245 = arith.andi %243, %244 : vector<8x128xi32>
    %246 = arith.addi %235, %245 : vector<8x128xi32>
    %c16_i32_60 = arith.constant 16 : i32
    %247 = vector.broadcast %c16_i32_60 : i32 to vector<8x128xi32>
    %248 = arith.shrui %243, %247 : vector<8x128xi32>
    %249 = arith.addi %242, %248 : vector<8x128xi32>
    %250 = arith.muli %32, %57 : vector<8x128xi32>
    %c65535_i32_61 = arith.constant 65535 : i32
    %251 = vector.broadcast %c65535_i32_61 : i32 to vector<8x128xi32>
    %252 = arith.andi %250, %251 : vector<8x128xi32>
    %253 = arith.addi %249, %252 : vector<8x128xi32>
    %254 = arith.muli %35, %54 : vector<8x128xi32>
    %c65535_i32_62 = arith.constant 65535 : i32
    %255 = vector.broadcast %c65535_i32_62 : i32 to vector<8x128xi32>
    %256 = arith.andi %254, %255 : vector<8x128xi32>
    %257 = arith.addi %253, %256 : vector<8x128xi32>
    %258 = arith.addi %203, %38 : vector<8x128xi32>
    %259 = arith.addi %228, %41 : vector<8x128xi32>
    %260 = arith.addi %246, %44 : vector<8x128xi32>
    %261 = arith.addi %257, %47 : vector<8x128xi32>
    %c65535_i32_63 = arith.constant 65535 : i32
    %262 = vector.broadcast %c65535_i32_63 : i32 to vector<8x128xi32>
    %263 = arith.andi %258, %262 : vector<8x128xi32>
    %c16_i32_64 = arith.constant 16 : i32
    %264 = vector.broadcast %c16_i32_64 : i32 to vector<8x128xi32>
    %265 = arith.shrui %258, %264 : vector<8x128xi32>
    %266 = arith.addi %259, %265 : vector<8x128xi32>
    %c65535_i32_65 = arith.constant 65535 : i32
    %267 = vector.broadcast %c65535_i32_65 : i32 to vector<8x128xi32>
    %268 = arith.andi %266, %267 : vector<8x128xi32>
    %c16_i32_66 = arith.constant 16 : i32
    %269 = vector.broadcast %c16_i32_66 : i32 to vector<8x128xi32>
    %270 = arith.shrui %266, %269 : vector<8x128xi32>
    %271 = arith.addi %260, %270 : vector<8x128xi32>
    %c65535_i32_67 = arith.constant 65535 : i32
    %272 = vector.broadcast %c65535_i32_67 : i32 to vector<8x128xi32>
    %273 = arith.andi %271, %272 : vector<8x128xi32>
    %c16_i32_68 = arith.constant 16 : i32
    %274 = vector.broadcast %c16_i32_68 : i32 to vector<8x128xi32>
    %275 = arith.shrui %271, %274 : vector<8x128xi32>
    %276 = arith.addi %261, %275 : vector<8x128xi32>
    %c65535_i32_69 = arith.constant 65535 : i32
    %277 = vector.broadcast %c65535_i32_69 : i32 to vector<8x128xi32>
    %278 = arith.andi %276, %277 : vector<8x128xi32>
    %c8191_i32 = arith.constant 8191 : i32
    %279 = vector.broadcast %c8191_i32 : i32 to vector<8x128xi32>
    %280 = arith.andi %278, %279 : vector<8x128xi32>
    %c13_i32 = arith.constant 13 : i32
    %281 = vector.broadcast %c13_i32 : i32 to vector<8x128xi32>
    %282 = arith.shrui %278, %281 : vector<8x128xi32>
    %c15_i32 = arith.constant 15 : i32
    %283 = vector.broadcast %c15_i32 : i32 to vector<8x128xi32>
    %284 = arith.shrui %278, %283 : vector<8x128xi32>
    %285 = arith.addi %263, %282 : vector<8x128xi32>
    %c65527_i32 = arith.constant 65527 : i32
    %286 = vector.broadcast %c65527_i32 : i32 to vector<8x128xi32>
    %287 = arith.muli %284, %286 : vector<8x128xi32>
    %288 = arith.addi %285, %287 : vector<8x128xi32>
    %c65535_i32_70 = arith.constant 65535 : i32
    %289 = vector.broadcast %c65535_i32_70 : i32 to vector<8x128xi32>
    %290 = arith.muli %284, %289 : vector<8x128xi32>
    %291 = arith.addi %268, %290 : vector<8x128xi32>
    %c65535_i32_71 = arith.constant 65535 : i32
    %292 = vector.broadcast %c65535_i32_71 : i32 to vector<8x128xi32>
    %293 = arith.muli %284, %292 : vector<8x128xi32>
    %294 = arith.addi %273, %293 : vector<8x128xi32>
    %c8191_i32_72 = arith.constant 8191 : i32
    %295 = vector.broadcast %c8191_i32_72 : i32 to vector<8x128xi32>
    %296 = arith.muli %284, %295 : vector<8x128xi32>
    %297 = arith.addi %280, %296 : vector<8x128xi32>
    %c65535_i32_73 = arith.constant 65535 : i32
    %298 = vector.broadcast %c65535_i32_73 : i32 to vector<8x128xi32>
    %299 = arith.andi %288, %298 : vector<8x128xi32>
    %c16_i32_74 = arith.constant 16 : i32
    %300 = vector.broadcast %c16_i32_74 : i32 to vector<8x128xi32>
    %301 = arith.shrui %288, %300 : vector<8x128xi32>
    %302 = arith.addi %291, %301 : vector<8x128xi32>
    %c65535_i32_75 = arith.constant 65535 : i32
    %303 = vector.broadcast %c65535_i32_75 : i32 to vector<8x128xi32>
    %304 = arith.andi %302, %303 : vector<8x128xi32>
    %c16_i32_76 = arith.constant 16 : i32
    %305 = vector.broadcast %c16_i32_76 : i32 to vector<8x128xi32>
    %306 = arith.shrui %302, %305 : vector<8x128xi32>
    %307 = arith.addi %294, %306 : vector<8x128xi32>
    %c65535_i32_77 = arith.constant 65535 : i32
    %308 = vector.broadcast %c65535_i32_77 : i32 to vector<8x128xi32>
    %309 = arith.andi %307, %308 : vector<8x128xi32>
    %c16_i32_78 = arith.constant 16 : i32
    %310 = vector.broadcast %c16_i32_78 : i32 to vector<8x128xi32>
    %311 = arith.shrui %307, %310 : vector<8x128xi32>
    %312 = arith.addi %297, %311 : vector<8x128xi32>
    %c65535_i32_79 = arith.constant 65535 : i32
    %313 = vector.broadcast %c65535_i32_79 : i32 to vector<8x128xi32>
    %314 = arith.andi %312, %313 : vector<8x128xi32>
    %c8192_i32 = arith.constant 8192 : i32
    %315 = vector.broadcast %c8192_i32 : i32 to vector<8x128xi32>
    %316 = arith.cmpi sge, %314, %315 : vector<8x128xi32>
    %c8191_i32_80 = arith.constant 8191 : i32
    %317 = vector.broadcast %c8191_i32_80 : i32 to vector<8x128xi32>
    %318 = arith.cmpi eq, %314, %317 : vector<8x128xi32>
    %c65535_i32_81 = arith.constant 65535 : i32
    %319 = vector.broadcast %c65535_i32_81 : i32 to vector<8x128xi32>
    %320 = arith.cmpi eq, %309, %319 : vector<8x128xi32>
    %321 = arith.andi %318, %320 : vector<8x128xi1>
    %c65535_i32_82 = arith.constant 65535 : i32
    %322 = vector.broadcast %c65535_i32_82 : i32 to vector<8x128xi32>
    %323 = arith.cmpi eq, %304, %322 : vector<8x128xi32>
    %324 = arith.andi %321, %323 : vector<8x128xi1>
    %c65535_i32_83 = arith.constant 65535 : i32
    %325 = vector.broadcast %c65535_i32_83 : i32 to vector<8x128xi32>
    %326 = arith.cmpi eq, %299, %325 : vector<8x128xi32>
    %327 = arith.andi %324, %326 : vector<8x128xi1>
    %328 = arith.ori %316, %327 : vector<8x128xi1>
    %c1_i32 = arith.constant 1 : i32
    %329 = vector.broadcast %c1_i32 : i32 to vector<8x128xi32>
    %330 = arith.addi %299, %329 : vector<8x128xi32>
    %c0_i32_84 = arith.constant 0 : i32
    %331 = vector.broadcast %c0_i32_84 : i32 to vector<8x128xi32>
    %332 = arith.addi %304, %331 : vector<8x128xi32>
    %c0_i32_85 = arith.constant 0 : i32
    %333 = vector.broadcast %c0_i32_85 : i32 to vector<8x128xi32>
    %334 = arith.addi %309, %333 : vector<8x128xi32>
    %c57344_i32 = arith.constant 57344 : i32
    %335 = vector.broadcast %c57344_i32 : i32 to vector<8x128xi32>
    %336 = arith.addi %314, %335 : vector<8x128xi32>
    %c65535_i32_86 = arith.constant 65535 : i32
    %337 = vector.broadcast %c65535_i32_86 : i32 to vector<8x128xi32>
    %338 = arith.andi %330, %337 : vector<8x128xi32>
    %c16_i32_87 = arith.constant 16 : i32
    %339 = vector.broadcast %c16_i32_87 : i32 to vector<8x128xi32>
    %340 = arith.shrui %330, %339 : vector<8x128xi32>
    %341 = arith.addi %332, %340 : vector<8x128xi32>
    %c65535_i32_88 = arith.constant 65535 : i32
    %342 = vector.broadcast %c65535_i32_88 : i32 to vector<8x128xi32>
    %343 = arith.andi %341, %342 : vector<8x128xi32>
    %c16_i32_89 = arith.constant 16 : i32
    %344 = vector.broadcast %c16_i32_89 : i32 to vector<8x128xi32>
    %345 = arith.shrui %341, %344 : vector<8x128xi32>
    %346 = arith.addi %334, %345 : vector<8x128xi32>
    %c65535_i32_90 = arith.constant 65535 : i32
    %347 = vector.broadcast %c65535_i32_90 : i32 to vector<8x128xi32>
    %348 = arith.andi %346, %347 : vector<8x128xi32>
    %c16_i32_91 = arith.constant 16 : i32
    %349 = vector.broadcast %c16_i32_91 : i32 to vector<8x128xi32>
    %350 = arith.shrui %346, %349 : vector<8x128xi32>
    %351 = arith.addi %336, %350 : vector<8x128xi32>
    %c65535_i32_92 = arith.constant 65535 : i32
    %352 = vector.broadcast %c65535_i32_92 : i32 to vector<8x128xi32>
    %353 = arith.andi %351, %352 : vector<8x128xi32>
    %354 = arith.select %328, %338, %299 : vector<8x128xi1>, vector<8x128xi32>
    %355 = arith.select %328, %343, %304 : vector<8x128xi1>, vector<8x128xi32>
    %356 = arith.select %328, %348, %309 : vector<8x128xi1>, vector<8x128xi32>
    %357 = arith.select %328, %353, %314 : vector<8x128xi1>, vector<8x128xi32>
    %c16_i32_93 = arith.constant 16 : i32
    %358 = vector.broadcast %c16_i32_93 : i32 to vector<8x128xi32>
    %359 = arith.shli %355, %358 : vector<8x128xi32>
    %360 = arith.ori %354, %359 : vector<8x128xi32>
    %361 = arith.index_cast %49 : i32 to index
    %c0_94 = arith.constant 0 : index
    %362 = vector.load %arg4[%361, %c0_94] : memref<8x128xi32, #tpu.memory_space<vmem>>, vector<8x128xi32>
    tpu.vector_store %arg4[%361, %c0_94], %360 {strides = array<i32>} : memref<8x128xi32, #tpu.memory_space<vmem>>, vector<8x128xi32>,
    %c16_i32_95 = arith.constant 16 : i32
    %363 = vector.broadcast %c16_i32_95 : i32 to vector<8x128xi32>
    %364 = arith.shli %357, %363 : vector<8x128xi32>
    %365 = arith.ori %356, %364 : vector<8x128xi32>
    %366 = arith.index_cast %49 : i32 to index
    %c0_96 = arith.constant 0 : index
    %367 = vector.load %arg5[%366, %c0_96] : memref<8x128xi32, #tpu.memory_space<vmem>>, vector<8x128xi32>
    tpu.vector_store %arg5[%366, %c0_96], %365 {strides = array<i32>} : memref<8x128xi32, #tpu.memory_space<vmem>>, vector<8x128xi32>,
    %c1_i32_97 = arith.constant 1 : i32
    return
  }
  func.func @transform_0(%arg0: i32, %arg1: i32) -> (i32, i32) {
    %c0_i32 = arith.constant 0 : i32
    %c0_i32_0 = arith.constant 0 : i32
    return %arg0, %c0_i32 : i32, i32
  }
  func.func @transform_1(%arg0: i32, %arg1: i32) -> (i32, i32) {
    %c0_i32 = arith.constant 0 : i32
    %c0_i32_0 = arith.constant 0 : i32
    return %c0_i32, %arg1 : i32, i32
  }
  func.func @transform_2(%arg0: i32, %arg1: i32) -> (i32, i32) {
    %c0_i32 = arith.constant 0 : i32
    return %arg0, %arg1 : i32, i32
  }
  func.func @transform_3(%arg0: i32, %arg1: i32) -> (i32, i32) {
    %c0_i32 = arith.constant 0 : i32
    return %arg0, %arg1 : i32, i32
  }
}

</mosaic_0001>

<llo_original>
// kernel: tpu_custom_call.1
$region0: #{tpu_custom_call.1}
  #allocation0 [shape = 'u32[]', space=smem, size = 0x4, offset = 0x4, fixed_abs, tag = 'smem constant byte address 0x4 - core index']
  #allocation1 [shape = 'u32[144,128]{1,0:T(1,128)}', space=vmem, size = 0x12000, scoped, tag = 'internal scratch']
  %s0 = inlined_call_operand.vmem [shape: u32[24,12], index: 0, kind: input, shape index: {}]
  %s1 = inlined_call_operand.vmem [shape: u32[16,128], index: 1, kind: input, shape index: {}]
  %s2 = inlined_call_operand.hbm [shape: u32[24,128], index: 2, kind: output, shape index: {0}]
  %s3 = inlined_call_operand.hbm [shape: u32[24,128], index: 3, kind: output, shape index: {1}]
  %4 = xla_tuple %s2, %s3
  %s5 = sld [smem:[#allocation0]]
  $region49: #{tpu_custom_call.1} parent=0
    _
  %s7 = ssub.s32 1, %s5
  %s8 = scalar_select 0, %s7, %s5
  $region1: #{tpu_custom_call.1} parent=0
    #allocation2 [shape = 'u8[8192]{0}', space=vmem, size = 0x2000, scoped, tag = 'output window, operand 0']
    #allocation3 [shape = 's32[2]{0}', space=sflag, size = 0x8, scoped, tag = 'scoped memory for tpu_custom_call.1']
    #allocation4 [shape = 'u8[8192]{0}', space=vmem, size = 0x2000, scoped, tag = 'output window, operand 1']
    #allocation5 [shape = 's32[2]{0}', space=sflag, size = 0x8, scoped, tag = 'scoped memory for tpu_custom_call.1']
    %9 = vsyncpa [#allocation3], 0
    %s10 = scalar_lea.sflag [#allocation3], 1
    %11 = vsyncpa %s10, 0
    %12 = vsyncpa [#allocation5], 0
    %s13 = scalar_lea.sflag [#allocation5], 1
    %14 = vsyncpa %s13, 0
    loop: start=0, step=1, limit=5
    $region2: #{tpu_custom_call.1} parent=1 // loop_pre_header
      _
    $region3: #{tpu_custom_call.1} parent=1 // loop_header
      %s16 = sphi 0, %s20
      %p17 = scmp.ge.s32.totalorder %s16, 5
      %s23 = sphi 0, %s35
      %s24 = sphi 0, %s31
      %s25 = sphi 0, %s23
      %s26 = sphi 0, %s24
      %s27 = sphi 0, %s25
      %s28 = sphi 0, %s26
      %s38 = sphi 0, %s40
      %s41 = sphi 0, %s38
      %s42 = sphi 0, %s41
      %s58 = sphi 0, %s42
      %s64 = sphi 0, %s66
      %s67 = sphi 0, %s64
      %s68 = sphi 0, %s67
      %s84 = sphi 0, %s68
      %s92 = sphi 0, %s94
      %s95 = sphi 0, %s92
      %s96 = sphi 0, %s95
      %s112 = sphi 0, %s96
      %s120 = sphi 0, %s122
      %s123 = sphi 0, %s120
      %s124 = sphi 0, %s123
      %s140 = sphi 0, %s124
    $region4: #{tpu_custom_call.1} parent=1 // loop_header_branch
      %19 = sbr.rel (%p17) target = $region8
    $region5: #{tpu_custom_call.1} parent=1 // loop_body
      %s21 = ssub.s32 %s16, 1
      %s22 = ssub.s32 %s16, 2
      %s29 = sadd.s32 1, %s24
      %p30 = scmp.ge.s32.totalorder %s29, 1
      %s31 = scalar_select %p30, 0, %s29
      %s32 = sadd.s32 1, %s23
      %s33 = scalar_select %p30, %s32, %s23
      %p34 = scmp.ge.s32.totalorder %s33, 3
      %s35 = scalar_select %p34, 0, %s33
      %s36 = ssub.s32 %s23, %s35
      %p37 = scmp.eq.s32.totalorder %s36, 0
      %s39 = sadd.s32 %s38, 1
      %s40 = scalar_select %p37, %s38, %s39
      %p43 = pneg %p37
      %p44 = scmp.eq.s32.totalorder %s16, 2
      %p45 = por %p43, %p44
      %p46 = scmp.ne.s32.totalorder %s38, %s41
      %p47 = scmp.eq.s32.totalorder %s16, 0
      %p48 = por %p46, %p47
      %p49 = scmp.ne.s32.totalorder %s38, %s41
      %p50 = scmp.eq.s32.totalorder %s21, 2
      %p51 = por %p49, %p50
      %p52 = scmp.ne.s32.totalorder %s41, %s42
      %p53 = scmp.eq.s32.totalorder %s21, 0
      %p54 = por %p52, %p53
      %p55 = scmp.ne.s32.totalorder %s41, %s42
      %p56 = scmp.eq.s32.totalorder %s22, 2
      %p57 = por %p55, %p56
      %p59 = scmp.ne.s32.totalorder %s42, %s58
      %p60 = scmp.eq.s32.totalorder %s22, 0
      %p61 = por %p59, %p60
      %s62 = ssub.s32 %s24, %s31
      %p63 = scmp.eq.s32.totalorder %s62, 0
      %s65 = sadd.s32 %s64, 1
      %s66 = scalar_select %p63, %s64, %s65
      %p69 = pneg %p63
      %p70 = scmp.eq.s32.totalorder %s16, 2
      %p71 = por %p69, %p70
      %p72 = scmp.ne.s32.totalorder %s64, %s67
      %p73 = scmp.eq.s32.totalorder %s16, 0
      %p74 = por %p72, %p73
      %p75 = scmp.ne.s32.totalorder %s64, %s67
      %p76 = scmp.eq.s32.totalorder %s21, 2
      %p77 = por %p75, %p76
      %p78 = scmp.ne.s32.totalorder %s67, %s68
      %p79 = scmp.eq.s32.totalorder %s21, 0
      %p80 = por %p78, %p79
      %p81 = scmp.ne.s32.totalorder %s67, %s68
      %p82 = scmp.eq.s32.totalorder %s22, 2
      %p83 = por %p81, %p82
      %p85 = scmp.ne.s32.totalorder %s68, %s84
      %p86 = scmp.eq.s32.totalorder %s22, 0
      %p87 = por %p85, %p86
      %s88 = ssub.s32 %s23, %s35
      %s89 = ssub.s32 %s24, %s31
      %s90 = sor.u32 %s88, %s89
      %p91 = scmp.eq.s32.totalorder %s90, 0
      %s93 = sadd.s32 %s92, 1
      %s94 = scalar_select %p91, %s92, %s93
      %p97 = pneg %p91
      %p98 = scmp.eq.s32.totalorder %s16, 2
      %p99 = por %p97, %p98
      %p100 = scmp.ne.s32.totalorder %s92, %s95
      %p101 = scmp.eq.s32.totalorder %s16, 0
      %p102 = por %p100, %p101
      %p103 = scmp.ne.s32.totalorder %s92, %s95
      %p104 = scmp.eq.s32.totalorder %s21, 2
      %p105 = por %p103, %p104
      %p106 = scmp.ne.s32.totalorder %s95, %s96
      %p107 = scmp.eq.s32.totalorder %s21, 0
      %p108 = por %p106, %p107
      %p109 = scmp.ne.s32.totalorder %s95, %s96
      %p110 = scmp.eq.s32.totalorder %s22, 2
      %p111 = por %p109, %p110
      %p113 = scmp.ne.s32.totalorder %s96, %s112
      %p114 = scmp.eq.s32.totalorder %s22, 0
      %p115 = por %p113, %p114
      %s116 = ssub.s32 %s23, %s35
      %s117 = ssub.s32 %s24, %s31
      %s118 = sor.u32 %s116, %s117
      %p119 = scmp.eq.s32.totalorder %s118, 0
      %s121 = sadd.s32 %s120, 1
      %s122 = scalar_select %p119, %s120, %s121
      %p125 = pneg %p119
      %p126 = scmp.eq.s32.totalorder %s16, 2
      %p127 = por %p125, %p126
      %p128 = scmp.ne.s32.totalorder %s120, %s123
      %p129 = scmp.eq.s32.totalorder %s16, 0
      %p130 = por %p128, %p129
      %p131 = scmp.ne.s32.totalorder %s120, %s123
      %p132 = scmp.eq.s32.totalorder %s21, 2
      %p133 = por %p131, %p132
      %p134 = scmp.ne.s32.totalorder %s123, %s124
      %p135 = scmp.eq.s32.totalorder %s21, 0
      %p136 = por %p134, %p135
      %p137 = scmp.ne.s32.totalorder %s123, %s124
      %p138 = scmp.eq.s32.totalorder %s22, 2
      %p139 = por %p137, %p138
      %p141 = scmp.ne.s32.totalorder %s124, %s140
      %p142 = scmp.eq.s32.totalorder %s22, 0
      %p143 = por %p141, %p142
      %p144 = scmp.le.s32.totalorder 1, %s16
      %p145 = scmp.lt.s32.totalorder %s16, 4
      %p146 = pnand %p144, %p145
      %p147 = pneg %p146
      // Predicated region
      $region9: #{tpu_custom_call.1} parent=5 // pred_check
        _
      $region10: #{tpu_custom_call.1} parent=5 // pred_check_branch
        %149 = sbr.rel (%p146) target = $region12
      $region11: #{tpu_custom_call.1} parent=5 // pred_region
        %s150 = ssub.s32 %s16, 1
        // Predicated region
        $region13: #{tpu_custom_call.1} parent=11 // pred_check
          %p151 = pneg %p80
        $region14: #{tpu_custom_call.1} parent=11 // pred_check_branch
          %153 = sbr.rel (%p151) target = $region16
        $region15: #{tpu_custom_call.1} parent=11 // pred_region
          %p154 = scmp.lt.s32.totalorder %s26, 0
          %s155 = scalar_select %p154, %s26, 0
          %s156 = smul.addr %s155, 8
          %s157 = scalar_lea.vmem %s1, %s156
        $region16: #{tpu_custom_call.1} parent=11 // pred_fallthru
          _
      $region12: #{tpu_custom_call.1} parent=5 // pred_fallthru
        _
      %p158 = scmp.lt.s32.totalorder %s16, 3
      // Predicated region
      $region17: #{tpu_custom_call.1} parent=5 // pred_check
        %p159 = pneg %p158
      $region18: #{tpu_custom_call.1} parent=5 // pred_check_branch
        %161 = sbr.rel (%p159) target = $region20
      $region19: #{tpu_custom_call.1} parent=5 // pred_region
        // Predicated region
        $region21: #{tpu_custom_call.1} parent=19 // pred_check
          %p162 = pneg %p48
        $region22: #{tpu_custom_call.1} parent=19 // pred_check_branch
          %164 = sbr.rel (%p162) target = $region24
        $region23: #{tpu_custom_call.1} parent=19 // pred_region
          %p165 = scmp.lt.s32.totalorder %s23, 2
          %s166 = scalar_select %p165, %s23, 2
          %s167 = smul.addr %s166, 8
          %s168 = scalar_lea.vmem %s0, %s167
        $region24: #{tpu_custom_call.1} parent=19 // pred_fallthru
          _
      $region20: #{tpu_custom_call.1} parent=5 // pred_fallthru
        _
      %p169 = scmp.le.s32.totalorder 1, %s16
      %p170 = scmp.lt.s32.totalorder %s16, 4
      %p171 = pnand %p169, %p170
      %p172 = pneg %p171
      // Predicated region
      $region25: #{tpu_custom_call.1} parent=5 // pred_check
        _
      $region26: #{tpu_custom_call.1} parent=5 // pred_check_branch
        %174 = sbr.rel (%p171) target = $region28
      $region27: #{tpu_custom_call.1} parent=5 // pred_region
        %s175 = ssub.s32 %s16, 1
        %p176 = scmp.lt.s32.totalorder %s25, 2
        %s177 = scalar_select %p176, %s25, 2
        %s178 = smul.addr %s177, 8
        %s179 = scalar_lea.vmem %s0, %s178
        %p180 = pneg %p54
        %p181 = pneg %p51
        %p182 = scmp.lt.s32.totalorder %s26, 0
        %s183 = scalar_select %p182, %s26, 0
        %s184 = smul.addr %s183, 8
        %s185 = scalar_lea.vmem %s1, %s184
        %p186 = pneg %p80
        %p187 = pneg %p77
        %p188 = pneg %p108
        %p189 = pneg %p105
        %s190 = sand.u32 %s95, 1
        %s191 = scalar_lea.sflag [#allocation3], %s190
        %s192 = sand.u32 %s95, 1
        %s193 = smul.addr %s192, 8
        %s194 = scalar_lea.vmem [#allocation2], %s193
        %p195 = pneg %p136
        %p196 = pneg %p133
        %s197 = sand.u32 %s123, 1
        %s198 = scalar_lea.sflag [#allocation5], %s197
        %s199 = sand.u32 %s123, 1
        %s200 = smul.addr %s199, 8
        %s201 = scalar_lea.vmem [#allocation4], %s200
        %p202 = scmp.lt.s32.totalorder %s25, 2
        %s203 = scalar_select %p202, %s25, 2
        %s204 = smul.addr %s203, 8
        %s205 = scalar_lea.vmem %s0, %s204
        %p206 = scmp.lt.s32.totalorder %s26, 0
        %s207 = scalar_select %p206, %s26, 0
        %s208 = smul.addr %s207, 8
        %s209 = scalar_lea.vmem %s1, %s208
        %v210 = vld [vmem:[%s209] sm:$0x1]
        %v211 = vlaneseq
        %v212 = vshrl.u32 %v211, 7
        %v213 = vsub.s32 0, %v212
        %v214 = vrot.slane %v210, %v213
        %v215 = vld [vmem:[%s209 + $0x1] sm:$0x1]
        %v216 = vlaneseq
        %v217 = vshrl.u32 %v216, 7
        %v218 = vsub.s32 0, %v217
        %v219 = vrot.slane %v215, %v218
        %v220 = vld [vmem:[%s209 + $0x2] sm:$0x1]
        %v221 = vlaneseq
        %v222 = vshrl.u32 %v221, 7
        %v223 = vsub.s32 0, %v222
        %v224 = vrot.slane %v220, %v223
        %v225 = vld [vmem:[%s209 + $0x3] sm:$0x1]
        %v226 = vlaneseq
        %v227 = vshrl.u32 %v226, 7
        %v228 = vsub.s32 0, %v227
        %v229 = vrot.slane %v225, %v228
        %v230 = vld [vmem:[%s209 + $0x4] sm:$0x1]
        %v231 = vlaneseq
        %v232 = vshrl.u32 %v231, 7
        %v233 = vsub.s32 0, %v232
        %v234 = vrot.slane %v230, %v233
        %v235 = vld [vmem:[%s209 + $0x5] sm:$0x1]
        %v236 = vlaneseq
        %v237 = vshrl.u32 %v236, 7
        %v238 = vsub.s32 0, %v237
        %v239 = vrot.slane %v235, %v238
        %v240 = vld [vmem:[%s209 + $0x6] sm:$0x1]
        %v241 = vlaneseq
        %v242 = vshrl.u32 %v241, 7
        %v243 = vsub.s32 0, %v242
        %v244 = vrot.slane %v240, %v243
        %v245 = vld [vmem:[%s209 + $0x7] sm:$0x1]
        %v246 = vlaneseq
        %v247 = vshrl.u32 %v246, 7
        %v248 = vsub.s32 0, %v247
        %v249 = vrot.slane %v245, %v248
        %v250 = vld [vmem:[%s209 + $0x8] sm:$0x1]
        %v251 = vlaneseq
        %v252 = vshrl.u32 %v251, 7
        %v253 = vsub.s32 0, %v252
        %v254 = vrot.slane %v250, %v253
        %v255 = vld [vmem:[%s209 + $0x9] sm:$0x1]
        %v256 = vlaneseq
        %v257 = vshrl.u32 %v256, 7
        %v258 = vsub.s32 0, %v257
        %v259 = vrot.slane %v255, %v258
        %v260 = vld [vmem:[%s209 + $0xa] sm:$0x1]
        %v261 = vlaneseq
        %v262 = vshrl.u32 %v261, 7
        %v263 = vsub.s32 0, %v262
        %v264 = vrot.slane %v260, %v263
        %v265 = vld [vmem:[%s209 + $0xb] sm:$0x1]
        %v266 = vlaneseq
        %v267 = vshrl.u32 %v266, 7
        %v268 = vsub.s32 0, %v267
        %v269 = vrot.slane %v265, %v268
        %v270 = vld [vmem:[%s209 + $0xc] sm:$0x1]
        %v271 = vlaneseq
        %v272 = vshrl.u32 %v271, 7
        %v273 = vsub.s32 0, %v272
        %v274 = vrot.slane %v270, %v273
        %v275 = vld [vmem:[%s209 + $0xd] sm:$0x1]
        %v276 = vlaneseq
        %v277 = vshrl.u32 %v276, 7
        %v278 = vsub.s32 0, %v277
        %v279 = vrot.slane %v275, %v278
        %v280 = vld [vmem:[%s209 + $0xe] sm:$0x1]
        %v281 = vlaneseq
        %v282 = vshrl.u32 %v281, 7
        %v283 = vsub.s32 0, %v282
        %v284 = vrot.slane %v280, %v283
        %v285 = vld [vmem:[%s209 + $0xf] sm:$0x1]
        %v286 = vlaneseq
        %v287 = vshrl.u32 %v286, 7
        %v288 = vsub.s32 0, %v287
        %v289 = vrot.slane %v285, %v288
        %v290 = vld [vmem:[%s205] sm:$0xff]
        %291 = vset.pattern.permute.xlu0 0
        %292 = vperm.xlu0 %291, %v290
        %v293 = vpop.permute.xlu0 %292
        %294 = vset.pattern.permute.xlu0 1
        %295 = vperm.xlu0 %294, %v290
        %v296 = vpop.permute.xlu0 %295
        %297 = vset.pattern.permute.xlu0 2
        %298 = vperm.xlu0 %297, %v290
        %v299 = vpop.permute.xlu0 %298
        %300 = vset.pattern.permute.xlu0 3
        %301 = vperm.xlu0 %300, %v290
        %v302 = vpop.permute.xlu0 %301
        %303 = vset.pattern.permute.xlu0 4
        %304 = vperm.xlu0 %303, %v290
        %v305 = vpop.permute.xlu0 %304
        %306 = vset.pattern.permute.xlu0 5
        %307 = vperm.xlu0 %306, %v290
        %v308 = vpop.permute.xlu0 %307
        %309 = vset.pattern.permute.xlu0 6
        %310 = vperm.xlu0 %309, %v290
        %v311 = vpop.permute.xlu0 %310
        %312 = vset.pattern.permute.xlu0 7
        %313 = vperm.xlu0 %312, %v290
        %v314 = vpop.permute.xlu0 %313
        %315 = vset.pattern.permute.xlu0 8
        %316 = vperm.xlu0 %315, %v290
        %v317 = vpop.permute.xlu0 %316
        %318 = vset.pattern.permute.xlu0 9
        %319 = vperm.xlu0 %318, %v290
        %v320 = vpop.permute.xlu0 %319
        %321 = vset.pattern.permute.xlu0 10
        %322 = vperm.xlu0 %321, %v290
        %v323 = vpop.permute.xlu0 %322
        %324 = vset.pattern.permute.xlu0 11
        %325 = vperm.xlu0 %324, %v290
        %v326 = vpop.permute.xlu0 %325
        %v327 = vmul.u32 %v214, %v317
        %v328 = vand.u32 %v327, 65535
        %v329 = vshrl.u32 %v327, 16
        %v330 = vmul.u32 %v214, %v320
        %v331 = vand.u32 %v330, 65535
        %v332 = vadd.s32 %v329, %v331
        %v333 = vshrl.u32 %v330, 16
        %v334 = vmul.u32 %v214, %v323
        %v335 = vand.u32 %v334, 65535
        %v336 = vadd.s32 %v333, %v335
        %v337 = vshrl.u32 %v334, 16
        %v338 = vmul.u32 %v214, %v326
        %v339 = vand.u32 %v338, 65535
        %v340 = vadd.s32 %v337, %v339
        %v341 = vmul.u32 %v219, %v317
        %v342 = vand.u32 %v341, 65535
        %v343 = vadd.s32 %v332, %v342
        %v344 = vshrl.u32 %v341, 16
        %v345 = vadd.s32 %v336, %v344
        %v346 = vmul.u32 %v219, %v320
        %v347 = vand.u32 %v346, 65535
        %v348 = vadd.s32 %v345, %v347
        %v349 = vshrl.u32 %v346, 16
        %v350 = vadd.s32 %v340, %v349
        %v351 = vmul.u32 %v219, %v323
        %v352 = vand.u32 %v351, 65535
        %v353 = vadd.s32 %v350, %v352
        %v354 = vmul.u32 %v224, %v317
        %v355 = vand.u32 %v354, 65535
        %v356 = vadd.s32 %v348, %v355
        %v357 = vshrl.u32 %v354, 16
        %v358 = vadd.s32 %v353, %v357
        %v359 = vmul.u32 %v224, %v320
        %v360 = vand.u32 %v359, 65535
        %v361 = vadd.s32 %v358, %v360
        %v362 = vmul.u32 %v229, %v317
        %v363 = vand.u32 %v362, 65535
        %v364 = vadd.s32 %v361, %v363
        %v365 = vmul.u32 %v234, %v305
        %v366 = vand.u32 %v365, 65535
        %v367 = vadd.s32 %v328, %v366
        %v368 = vshrl.u32 %v365, 16
        %v369 = vadd.s32 %v343, %v368
        %v370 = vmul.u32 %v234, %v308
        %v371 = vand.u32 %v370, 65535
        %v372 = vadd.s32 %v369, %v371
        %v373 = vshrl.u32 %v370, 16
        %v374 = vadd.s32 %v356, %v373
        %v375 = vmul.u32 %v234, %v311
        %v376 = vand.u32 %v375, 65535
        %v377 = vadd.s32 %v374, %v376
        %v378 = vshrl.u32 %v375, 16
        %v379 = vadd.s32 %v364, %v378
        %v380 = vmul.u32 %v234, %v314
        %v381 = vand.u32 %v380, 65535
        %v382 = vadd.s32 %v379, %v381
        %v383 = vmul.u32 %v239, %v305
        %v384 = vand.u32 %v383, 65535
        %v385 = vadd.s32 %v372, %v384
        %v386 = vshrl.u32 %v383, 16
        %v387 = vadd.s32 %v377, %v386
        %v388 = vmul.u32 %v239, %v308
        %v389 = vand.u32 %v388, 65535
        %v390 = vadd.s32 %v387, %v389
        %v391 = vshrl.u32 %v388, 16
        %v392 = vadd.s32 %v382, %v391
        %v393 = vmul.u32 %v239, %v311
        %v394 = vand.u32 %v393, 65535
        %v395 = vadd.s32 %v392, %v394
        %v396 = vmul.u32 %v244, %v305
        %v397 = vand.u32 %v396, 65535
        %v398 = vadd.s32 %v390, %v397
        %v399 = vshrl.u32 %v396, 16
        %v400 = vadd.s32 %v395, %v399
        %v401 = vmul.u32 %v244, %v308
        %v402 = vand.u32 %v401, 65535
        %v403 = vadd.s32 %v400, %v402
        %v404 = vmul.u32 %v249, %v305
        %v405 = vand.u32 %v404, 65535
        %v406 = vadd.s32 %v403, %v405
        %v407 = vmul.u32 %v254, %v293
        %v408 = vand.u32 %v407, 65535
        %v409 = vadd.s32 %v367, %v408
        %v410 = vshrl.u32 %v407, 16
        %v411 = vadd.s32 %v385, %v410
        %v412 = vmul.u32 %v254, %v296
        %v413 = vand.u32 %v412, 65535
        %v414 = vadd.s32 %v411, %v413
        %v415 = vshrl.u32 %v412, 16
        %v416 = vadd.s32 %v398, %v415
        %v417 = vmul.u32 %v254, %v299
        %v418 = vand.u32 %v417, 65535
        %v419 = vadd.s32 %v416, %v418
        %v420 = vshrl.u32 %v417, 16
        %v421 = vadd.s32 %v406, %v420
        %v422 = vmul.u32 %v254, %v302
        %v423 = vand.u32 %v422, 65535
        %v424 = vadd.s32 %v421, %v423
        %v425 = vmul.u32 %v259, %v293
        %v426 = vand.u32 %v425, 65535
        %v427 = vadd.s32 %v414, %v426
        %v428 = vshrl.u32 %v425, 16
        %v429 = vadd.s32 %v419, %v428
        %v430 = vmul.u32 %v259, %v296
        %v431 = vand.u32 %v430, 65535
        %v432 = vadd.s32 %v429, %v431
        %v433 = vshrl.u32 %v430, 16
        %v434 = vadd.s32 %v424, %v433
        %v435 = vmul.u32 %v259, %v299
        %v436 = vand.u32 %v435, 65535
        %v437 = vadd.s32 %v434, %v436
        %v438 = vmul.u32 %v264, %v293
        %v439 = vand.u32 %v438, 65535
        %v440 = vadd.s32 %v432, %v439
        %v441 = vshrl.u32 %v438, 16
        %v442 = vadd.s32 %v437, %v441
        %v443 = vmul.u32 %v264, %v296
        %v444 = vand.u32 %v443, 65535
        %v445 = vadd.s32 %v442, %v444
        %v446 = vmul.u32 %v269, %v293
        %v447 = vand.u32 %v446, 65535
        %v448 = vadd.s32 %v445, %v447
        %v449 = vadd.s32 %v409, %v274
        %v450 = vadd.s32 %v427, %v279
        %v451 = vadd.s32 %v440, %v284
        %v452 = vadd.s32 %v448, %v289
        %v453 = vand.u32 %v449, 65535
        %v454 = vshrl.u32 %v449, 16
        %v455 = vadd.s32 %v450, %v454
        %v456 = vand.u32 %v455, 65535
        %v457 = vshrl.u32 %v455, 16
        %v458 = vadd.s32 %v451, %v457
        %v459 = vand.u32 %v458, 65535
        %v460 = vshrl.u32 %v458, 16
        %v461 = vadd.s32 %v452, %v460
        %v462 = vand.u32 %v461, 65535
        %v463 = vand.u32 %v462, 8191
        %v464 = vshrl.u32 %v462, 13
        %v465 = vshrl.u32 %v462, 15
        %v466 = vadd.s32 %v453, %v464
        %v467 = vmul.u32 %v465, 65527
        %v468 = vadd.s32 %v466, %v467
        %v469 = vmul.u32 %v465, 65535
        %v470 = vadd.s32 %v456, %v469
        %v471 = vadd.s32 %v459, %v469
        %v472 = vmul.u32 %v465, 8191
        %v473 = vadd.s32 %v463, %v472
        %v474 = vand.u32 %v468, 65535
        %v475 = vshrl.u32 %v468, 16
        %v476 = vadd.s32 %v470, %v475
        %v477 = vand.u32 %v476, 65535
        %v478 = vshrl.u32 %v476, 16
        %v479 = vadd.s32 %v471, %v478
        %v480 = vand.u32 %v479, 65535
        %v481 = vshrl.u32 %v479, 16
        %v482 = vadd.s32 %v473, %v481
        %v483 = vand.u32 %v482, 65535
        %vm484 = vcmp.ge.s32.totalorder %v483, 8192
        %vm485 = vcmp.eq.s32.totalorder %v483, 8191
        %vm486 = vcmp.eq.s32.totalorder %v480, 65535
        %vm487 = vmand %vm485, %vm486
        %vm488 = vcmp.eq.s32.totalorder %v477, 65535
        %vm489 = vmand %vm487, %vm488
        %vm490 = vcmp.eq.s32.totalorder %v474, 65535
        %vm491 = vmand %vm489, %vm490
        %vm492 = vmor %vm484, %vm491
        %v493 = vadd.s32 %v474, 1
        %v494 = vadd.s32 %v483, 57344
        %v495 = vand.u32 %v493, 65535
        %v496 = vshrl.u32 %v493, 16
        %v497 = vadd.s32 %v477, %v496
        %v498 = vand.u32 %v497, 65535
        %v499 = vshrl.u32 %v497, 16
        %v500 = vadd.s32 %v480, %v499
        %v501 = vand.u32 %v500, 65535
        %v502 = vshrl.u32 %v500, 16
        %v503 = vadd.s32 %v494, %v502
        %v504 = vand.u32 %v503, 65535
        %v505 = vsel %vm492, %v495, %v474
        %v506 = vsel %vm492, %v498, %v477
        %v507 = vsel %vm492, %v501, %v480
        %v508 = vsel %vm492, %v504, %v483
        %v509 = vshll.u32 %v506, 16
        %v510 = vor.u32 %v505, %v509
        %511 = vst [vmem:[%s194] sm:$0xff] %v510
        %v512 = vshll.u32 %v508, 16
        %v513 = vor.u32 %v507, %v512
        %514 = vst [vmem:[%s201] sm:$0xff] %v513
        %s515 = sand.u32 %s95, 1
        %s516 = scalar_lea.sflag [#allocation3], %s515
        %s517 = sand.u32 %s95, 1
        %s518 = smul.addr %s517, 8
        %s519 = scalar_lea.vmem [#allocation2], %s518
        %s520 = sand.u32 %s123, 1
        %s521 = scalar_lea.sflag [#allocation5], %s520
        %s522 = sand.u32 %s123, 1
        %s523 = smul.addr %s522, 8
        %s524 = scalar_lea.vmem [#allocation4], %s523
        // Predicated region
        $region29: #{tpu_custom_call.1} parent=27 // pred_check
          %p525 = pneg %p105
        $region30: #{tpu_custom_call.1} parent=27 // pred_check_branch
          %527 = sbr.rel (%p525) target = $region32
        $region31: #{tpu_custom_call.1} parent=27 // pred_region
          %s529 = ssub.s32 128, 128
          %530 = vsyncadd %s516, %s529
          %s531 = sadd.s32 %s26, %s25
          %s532 = smul.addr %s531, 128
          %s533 = scalar_lea.hbm %s2, %s532
          %s535 = sshll.u32 %s519, 4
          %s536 = int_to_ptr.vmem [resolvable:$true] %s535
          %538 = dma.vmem_to_hbm [thread:$0]  %s536, 128, %s533, %s516
        $region32: #{tpu_custom_call.1} parent=27 // pred_fallthru
          _
        // Predicated region
        $region33: #{tpu_custom_call.1} parent=27 // pred_check
          %p539 = pneg %p133
        $region34: #{tpu_custom_call.1} parent=27 // pred_check_branch
          %541 = sbr.rel (%p539) target = $region36
        $region35: #{tpu_custom_call.1} parent=27 // pred_region
          %s543 = ssub.s32 128, 128
          %544 = vsyncadd %s521, %s543
          %s545 = sadd.s32 %s26, %s25
          %s546 = smul.addr %s545, 128
          %s547 = scalar_lea.hbm %s3, %s546
          %s549 = sshll.u32 %s524, 4
          %s550 = int_to_ptr.vmem [resolvable:$true] %s549
          %552 = dma.vmem_to_hbm [thread:$0]  %s550, 128, %s547, %s521
        $region36: #{tpu_custom_call.1} parent=27 // pred_fallthru
          _
      $region28: #{tpu_custom_call.1} parent=5 // pred_fallthru
        _
      %p553 = scmp.le.s32.totalorder 2, %s16
      // Predicated region
      $region37: #{tpu_custom_call.1} parent=5 // pred_check
        %p554 = pneg %p553
      $region38: #{tpu_custom_call.1} parent=5 // pred_check_branch
        %556 = sbr.rel (%p554) target = $region40
      $region39: #{tpu_custom_call.1} parent=5 // pred_region
        %s557 = ssub.s32 %s16, 2
        // Predicated region
        $region41: #{tpu_custom_call.1} parent=39 // pred_check
          %p558 = pneg %p111
        $region42: #{tpu_custom_call.1} parent=39 // pred_check_branch
          %560 = sbr.rel (%p558) target = $region44
        $region43: #{tpu_custom_call.1} parent=39 // pred_region
          %s561 = sand.u32 %s96, 1
          %s562 = scalar_lea.sflag [#allocation3], %s561
          %s563 = sand.u32 %s96, 1
          %s564 = smul.addr %s563, 8
          %s565 = scalar_lea.vmem [#allocation2], %s564
          %566 = dma.done %s562, 128
        $region44: #{tpu_custom_call.1} parent=39 // pred_fallthru
          _
        // Predicated region
        $region45: #{tpu_custom_call.1} parent=39 // pred_check
          %p567 = pneg %p139
        $region46: #{tpu_custom_call.1} parent=39 // pred_check_branch
          %569 = sbr.rel (%p567) target = $region48
        $region47: #{tpu_custom_call.1} parent=39 // pred_region
          %s570 = sand.u32 %s124, 1
          %s571 = scalar_lea.sflag [#allocation5], %s570
          %s572 = sand.u32 %s124, 1
          %s573 = smul.addr %s572, 8
          %s574 = scalar_lea.vmem [#allocation4], %s573
          %575 = dma.done %s571, 128
        $region48: #{tpu_custom_call.1} parent=39 // pred_fallthru
          _
      $region40: #{tpu_custom_call.1} parent=5 // pred_fallthru
        _
    $region6: #{tpu_custom_call.1} parent=1 // loop_footer
      %s20 = sadd.s32 1, %s16
    $region7: #{tpu_custom_call.1} parent=1 // loop_footer_branch
      %15 = sbr.rel target = $region3
    $region8: #{tpu_custom_call.1} parent=1 // loop_exit
      _
    %576 = vsyncpa [#allocation3], 1
    %s577 = scalar_lea.sflag [#allocation3], 1
    %578 = vsyncpa %s577, 1
    %579 = vsyncpa [#allocation5], 1
    %s580 = scalar_lea.sflag [#allocation5], 1
    %581 = vsyncpa %s580, 1

</llo_original>
